<compile_context>
chip_gen: v5e
topology: v5e:2x2
jax: 0.10.0
libtpu: 0.0.40
codegen_flags: <defaults>
</compile_context>

<pallas_src>
import functools

import jax
import jax.numpy as jnp
from jax import lax
from jax.experimental import pallas as pl
from jax.experimental.pallas import tpu as pltpu


def _round_up(x, m):
    return ((x + m - 1) // m) * m


def _row_cap():
    # v5e MXU M is 128; v6e/v7x MXUs are 256-wide, so bigger M tiles help there.
    try:
        kind = jax.devices()[0].device_kind.lower()
    except Exception:  # pragma: no cover
        kind = ""
    return 128 if "v5" in kind else 256


# ---------------------------------------------------------------------------
# Small-batch path (B <= 64): DMA-gather only the indexed rows from HBM.
# ---------------------------------------------------------------------------
def _gather_dma_kernel(idx_ref, table_ref, out_ref, buf_ref, sem, *, n_rows):
    # idx_ref  : SMEM (n_rows,) int32   -- clamped indices (scalar prefetch)
    # table_ref: HBM  (N, D)            -- embedding table, never staged whole
    # out_ref  : VMEM (n_rows, D)       -- output tile
    # buf_ref  : VMEM (n_rows, D)       -- DMA landing buffer
    # sem      : DMA semaphores, one per gathered row
    copies = []
    for i in range(n_rows):  # static unrolled loop; n_rows <= 64
        cp = pltpu.make_async_copy(
            table_ref.at[pl.ds(idx_ref[i], 1), :],
            buf_ref.at[pl.ds(i, 1), :],
            sem.at[i],
        )
        cp.start()
        copies.append(cp)
    for cp in copies:
        cp.wait()
    out_ref[...] = buf_ref[...]


def _gather_small(idx, emb_table):
    B = int(idx.shape[0])
    N, D = emb_table.shape
    kernel = functools.partial(_gather_dma_kernel, n_rows=B)
    return pl.pallas_call(
        kernel,
        grid_spec=pltpu.PrefetchScalarGridSpec(
            num_scalar_prefetch=1,
            grid=(1,),
            in_specs=[pl.BlockSpec(memory_space=pl.ANY)],  # table stays in HBM
            out_specs=pl.BlockSpec((B, D), lambda i, idx_ref: (0, 0)),
            scratch_shapes=[
                pltpu.VMEM((B, D), emb_table.dtype),
                pltpu.SemaphoreType.DMA((B,)),
            ],
        ),
        out_shape=jax.ShapeDtypeStruct((B, D), emb_table.dtype),
        compiler_params=pltpu.CompilerParams(
            dimension_semantics=("arbitrary",),
        ),
    )(idx, emb_table)


# ---------------------------------------------------------------------------
# Large-batch path: one-hot MXU matmul per sublane-dense output tile.
# ---------------------------------------------------------------------------
def _onehot_matmul_kernel(idx_ref, emb_ref, out_ref):
    # idx_ref : VMEM (block_rows, 1) int32  -- per-tile index column
    # emb_ref : VMEM (N_pad, D)             -- full table, resident (const idx)
    # out_ref : VMEM (block_rows, D)
    block_rows = out_ref.shape[0]
    n_pad = emb_ref.shape[0]
    iota = lax.broadcasted_iota(jnp.int32, (block_rows, n_pad), 1)
    one_hot = (iota == idx_ref[...]).astype(emb_ref.dtype)
    out_ref[...] = jnp.dot(
        one_hot, emb_ref[...], preferred_element_type=jnp.float32
    ).astype(out_ref.dtype)


def _gather_large(idx, emb_table, *, row_cap):
    B = int(idx.shape[0])
    N, D = emb_table.shape

    # Pad table rows to a multiple of 8 so the matmul K dim is clean.
    n_pad = _round_up(N, 8)
    emb_padded = jnp.pad(emb_table, ((0, n_pad - N), (0, 0)))

    # Choose tile rows so padding waste per call stays < 8 rows (and <= cap).
    n_tiles = -(-B // row_cap)
    block_rows = _round_up(-(-B // n_tiles), 8)
    b_pad = n_tiles * block_rows
    # Pad indices gather row 0; the extra rows are sliced off below (benign).
    idx_col = jnp.pad(idx, (0, b_pad - B)).reshape(b_pad, 1)

    semantics = "parallel" if n_tiles >= 4 else "arbitrary"

    out = pl.pallas_call(
        _onehot_matmul_kernel,
        grid=(n_tiles,),
        in_specs=[
            pl.BlockSpec((block_rows, 1), lambda i: (i, 0)),
            # Full table resident in VMEM (constant block index).
            # TODO(synk): single-buffer this block (pipeline_mode=pl.Buffered(1))
            # once verified on the target jax version; minor VMEM saving only.
            pl.BlockSpec((n_pad, D), lambda i: (0, 0)),
        ],
        out_specs=pl.BlockSpec((block_rows, D), lambda i: (i, 0)),
        out_shape=jax.ShapeDtypeStruct((b_pad, D), emb_table.dtype),
        compiler_params=pltpu.CompilerParams(
            dimension_semantics=(semantics,),
        ),
    )(idx_col, emb_padded)
    return out[:B]


# ---------------------------------------------------------------------------
# Wrapper matching IntConditioner.forward semantics.
# ---------------------------------------------------------------------------
def int_conditioner_forward(ints, emb_table, *, min_val=0, max_val=512):
    """ints: (B,) int array; emb_table: (max_val - min_val + 1, output_dim)."""
    if min_val != 0:
        # PyTorch indexes the table with the clamped raw value (no `- min_val`);
        # only min_val == 0 is well defined.  Fail loudly instead of clipping.
        raise ValueError("IntConditioner kernel requires min_val == 0")
    N, D = emb_table.shape
    if N != max_val - min_val + 1:
        raise ValueError("embedding table rows must equal max_val - min_val + 1")

    B = int(ints.shape[0])
    if B == 0:
        return [jnp.zeros((0, 1, D), emb_table.dtype),
                jnp.ones((0, 1), jnp.float32)]

    # Clamp once in the wrapper (indices are then in-bounds of the table).
    idx = jnp.clip(ints.astype(jnp.int32), min_val, max_val)

    if B <= 64:
        rows = _gather_small(idx, emb_table)
    else:
        rows = _gather_large(idx, emb_table, row_cap=_row_cap())

    embeds = rows[:, None, :]                     # (B, 1, D)
    mask = jnp.ones((B, 1), dtype=jnp.float32)    # constant; built in wrapper
    return [embeds, mask]


if __name__ == "__main__":
    output_dim = 128
    min_val, max_val = 0, 512

    key = jax.random.PRNGKey(0)
    k_emb, k_small, k_large = jax.random.split(key, 3)

    # nn.Embedding default init: N(0, 1). Deterministic synthetic weights.
    emb_table = jax.random.normal(
        k_emb, (max_val - min_val + 1, output_dim), dtype=jnp.float32
    )

    def reference(ints):
        clamped = jnp.clip(ints, min_val, max_val)
        return emb_table[clamped][:, None, :]

    ok = True

    # --- small-batch path (DMA row gather), includes out-of-range values ---
    ints_small = jax.random.randint(k_small, (4,), -10, 600, dtype=jnp.int32)
    embeds_s, mask_s = int_conditioner_forward(
        ints_small, emb_table, min_val=min_val, max_val=max_val
    )
    jax.block_until_ready(embeds_s)
    jax.block_until_ready(mask_s)
    ok &= embeds_s.shape == (4, 1, output_dim)
    ok &= mask_s.shape == (4, 1)
    ok &= bool(jnp.allclose(embeds_s, reference(ints_small)))
    ok &= bool(jnp.allclose(mask_s, jnp.ones((4, 1), jnp.float32)))

    # --- large-batch path (one-hot MXU matmul, multi-tile grid) ---
    ints_large = jax.random.randint(k_large, (200,), -10, 600, dtype=jnp.int32)
    embeds_l, mask_l = int_conditioner_forward(
        ints_large, emb_table, min_val=min_val, max_val=max_val
    )
    jax.block_until_ready(embeds_l)
    jax.block_until_ready(mask_l)
    ok &= embeds_l.shape == (200, 1, output_dim)
    ok &= mask_l.shape == (200, 1)
    ok &= bool(jnp.allclose(embeds_l, reference(ints_large)))
    ok &= bool(jnp.allclose(mask_l, jnp.ones((200, 1), jnp.float32)))

    assert ok
    print("KERNEL_OK")
</pallas_src>

<mosaic_0001>
module attributes {stable_mosaic.version = 11 : i64} {
  func.func @_gather_dma_kernel(%arg0: i32, %arg1: memref<4xi32, #tpu.memory_space<smem>>, %arg2: memref<513x128xf32, #tpu.memory_space<any>>, %arg3: memref<4x128xf32, #tpu.memory_space<vmem>>, %arg4: memref<4x128xf32, #tpu.memory_space<vmem>>, %arg5: memref<4x!tpu.dma_semaphore, #tpu.memory_space<semaphore_mem>>) attributes {dimension_semantics = [#tpu.dimension_semantics<arbitrary>], iteration_bounds = array<i64: 1>, scalar_prefetch = 1 : i64, scratch_operands = 2 : i64, tpu.core_type = #tpu.core_type<tc>, window_params = [{}, {pipeline_mode = #tpu.pipeline_mode<synchronous>, transform_indices = @transform_1, window_bounds = array<i64: 4, 128>}]} {
    %c0 = arith.constant 0 : index
    %0 = memref.load %arg1[%c0] : memref<4xi32, #tpu.memory_space<smem>>
    %c0_i32 = arith.constant 0 : i32
    %c0_i32_0 = arith.constant 0 : i32
    %1 = tpu.memref_slice %arg2[%0, %c0_i32_0] : memref<513x128xf32, #tpu.memory_space<any>> -> memref<1x128xf32, #tpu.memory_space<any>>
    %c0_i32_1 = arith.constant 0 : i32
    %c0_i32_2 = arith.constant 0 : i32
    %2 = tpu.memref_slice %arg4[%c0_i32_1, %c0_i32_2] : memref<4x128xf32, #tpu.memory_space<vmem>> -> memref<1x128xf32, #tpu.memory_space<vmem>>
    %3 = tpu.memref_slice %arg5[%c0_i32] : memref<4x!tpu.dma_semaphore, #tpu.memory_space<semaphore_mem>> -> memref<1x!tpu.dma_semaphore, #tpu.memory_space<semaphore_mem>>
    %4 = tpu.memref_squeeze %3 : memref<1x!tpu.dma_semaphore, #tpu.memory_space<semaphore_mem>> -> memref<!tpu.dma_semaphore, #tpu.memory_space<semaphore_mem>>
    tpu.enqueue_dma source(%1 : memref<1x128xf32, #tpu.memory_space<any>>) target(%2 : memref<1x128xf32, #tpu.memory_space<vmem>>) target_semaphore(%4 : memref<!tpu.dma_semaphore, #tpu.memory_space<semaphore_mem>>)
    %c1 = arith.constant 1 : index
    %5 = memref.load %arg1[%c1] : memref<4xi32, #tpu.memory_space<smem>>
    %c1_i32 = arith.constant 1 : i32
    %c0_i32_3 = arith.constant 0 : i32
    %6 = tpu.memref_slice %arg2[%5, %c0_i32_3] : memref<513x128xf32, #tpu.memory_space<any>> -> memref<1x128xf32, #tpu.memory_space<any>>
    %c1_i32_4 = arith.constant 1 : i32
    %c0_i32_5 = arith.constant 0 : i32
    %7 = tpu.memref_slice %arg4[%c1_i32_4, %c0_i32_5] : memref<4x128xf32, #tpu.memory_space<vmem>> -> memref<1x128xf32, #tpu.memory_space<vmem>>
    %8 = tpu.memref_slice %arg5[%c1_i32] : memref<4x!tpu.dma_semaphore, #tpu.memory_space<semaphore_mem>> -> memref<1x!tpu.dma_semaphore, #tpu.memory_space<semaphore_mem>>
    %9 = tpu.memref_squeeze %8 : memref<1x!tpu.dma_semaphore, #tpu.memory_space<semaphore_mem>> -> memref<!tpu.dma_semaphore, #tpu.memory_space<semaphore_mem>>
    tpu.enqueue_dma source(%6 : memref<1x128xf32, #tpu.memory_space<any>>) target(%7 : memref<1x128xf32, #tpu.memory_space<vmem>>) target_semaphore(%9 : memref<!tpu.dma_semaphore, #tpu.memory_space<semaphore_mem>>)
    %c2 = arith.constant 2 : index
    %10 = memref.load %arg1[%c2] : memref<4xi32, #tpu.memory_space<smem>>
    %c2_i32 = arith.constant 2 : i32
    %c0_i32_6 = arith.constant 0 : i32
    %11 = tpu.memref_slice %arg2[%10, %c0_i32_6] : memref<513x128xf32, #tpu.memory_space<any>> -> memref<1x128xf32, #tpu.memory_space<any>>
    %c2_i32_7 = arith.constant 2 : i32
    %c0_i32_8 = arith.constant 0 : i32
    %12 = tpu.memref_slice %arg4[%c2_i32_7, %c0_i32_8] : memref<4x128xf32, #tpu.memory_space<vmem>> -> memref<1x128xf32, #tpu.memory_space<vmem>>
    %13 = tpu.memref_slice %arg5[%c2_i32] : memref<4x!tpu.dma_semaphore, #tpu.memory_space<semaphore_mem>> -> memref<1x!tpu.dma_semaphore, #tpu.memory_space<semaphore_mem>>
    %14 = tpu.memref_squeeze %13 : memref<1x!tpu.dma_semaphore, #tpu.memory_space<semaphore_mem>> -> memref<!tpu.dma_semaphore, #tpu.memory_space<semaphore_mem>>
    tpu.enqueue_dma source(%11 : memref<1x128xf32, #tpu.memory_space<any>>) target(%12 : memref<1x128xf32, #tpu.memory_space<vmem>>) target_semaphore(%14 : memref<!tpu.dma_semaphore, #tpu.memory_space<semaphore_mem>>)
    %c3 = arith.constant 3 : index
    %15 = memref.load %arg1[%c3] : memref<4xi32, #tpu.memory_space<smem>>
    %c3_i32 = arith.constant 3 : i32
    %c0_i32_9 = arith.constant 0 : i32
    %16 = tpu.memref_slice %arg2[%15, %c0_i32_9] : memref<513x128xf32, #tpu.memory_space<any>> -> memref<1x128xf32, #tpu.memory_space<any>>
    %c3_i32_10 = arith.constant 3 : i32
    %c0_i32_11 = arith.constant 0 : i32
    %17 = tpu.memref_slice %arg4[%c3_i32_10, %c0_i32_11] : memref<4x128xf32, #tpu.memory_space<vmem>> -> memref<1x128xf32, #tpu.memory_space<vmem>>
    %18 = tpu.memref_slice %arg5[%c3_i32] : memref<4x!tpu.dma_semaphore, #tpu.memory_space<semaphore_mem>> -> memref<1x!tpu.dma_semaphore, #tpu.memory_space<semaphore_mem>>
    %19 = tpu.memref_squeeze %18 : memref<1x!tpu.dma_semaphore, #tpu.memory_space<semaphore_mem>> -> memref<!tpu.dma_semaphore, #tpu.memory_space<semaphore_mem>>
    tpu.enqueue_dma source(%16 : memref<1x128xf32, #tpu.memory_space<any>>) target(%17 : memref<1x128xf32, #tpu.memory_space<vmem>>) target_semaphore(%19 : memref<!tpu.dma_semaphore, #tpu.memory_space<semaphore_mem>>)
    %c0_i32_12 = arith.constant 0 : i32
    %c0_i32_13 = arith.constant 0 : i32
    %20 = tpu.memref_slice %arg2[%0, %c0_i32_13] : memref<513x128xf32, #tpu.memory_space<any>> -> memref<1x128xf32, #tpu.memory_space<any>>
    %c0_i32_14 = arith.constant 0 : i32
    %c0_i32_15 = arith.constant 0 : i32
    %21 = tpu.memref_slice %arg4[%c0_i32_14, %c0_i32_15] : memref<4x128xf32, #tpu.memory_space<vmem>> -> memref<1x128xf32, #tpu.memory_space<vmem>>
    %22 = tpu.memref_slice %arg5[%c0_i32_12] : memref<4x!tpu.dma_semaphore, #tpu.memory_space<semaphore_mem>> -> memref<1x!tpu.dma_semaphore, #tpu.memory_space<semaphore_mem>>
    %23 = tpu.memref_squeeze %22 : memref<1x!tpu.dma_semaphore, #tpu.memory_space<semaphore_mem>> -> memref<!tpu.dma_semaphore, #tpu.memory_space<semaphore_mem>>
    tpu.wait_dma2 semaphore(%23 : memref<!tpu.dma_semaphore, #tpu.memory_space<semaphore_mem>>) src(%20 : memref<1x128xf32, #tpu.memory_space<any>>) dst(%21 : memref<1x128xf32, #tpu.memory_space<vmem>>)
    %c1_i32_16 = arith.constant 1 : i32
    %c0_i32_17 = arith.constant 0 : i32
    %24 = tpu.memref_slice %arg2[%5, %c0_i32_17] : memref<513x128xf32, #tpu.memory_space<any>> -> memref<1x128xf32, #tpu.memory_space<any>>
    %c1_i32_18 = arith.constant 1 : i32
    %c0_i32_19 = arith.constant 0 : i32
    %25 = tpu.memref_slice %arg4[%c1_i32_18, %c0_i32_19] : memref<4x128xf32, #tpu.memory_space<vmem>> -> memref<1x128xf32, #tpu.memory_space<vmem>>
    %26 = tpu.memref_slice %arg5[%c1_i32_16] : memref<4x!tpu.dma_semaphore, #tpu.memory_space<semaphore_mem>> -> memref<1x!tpu.dma_semaphore, #tpu.memory_space<semaphore_mem>>
    %27 = tpu.memref_squeeze %26 : memref<1x!tpu.dma_semaphore, #tpu.memory_space<semaphore_mem>> -> memref<!tpu.dma_semaphore, #tpu.memory_space<semaphore_mem>>
    tpu.wait_dma2 semaphore(%27 : memref<!tpu.dma_semaphore, #tpu.memory_space<semaphore_mem>>) src(%24 : memref<1x128xf32, #tpu.memory_space<any>>) dst(%25 : memref<1x128xf32, #tpu.memory_space<vmem>>)
    %c2_i32_20 = arith.constant 2 : i32
    %c0_i32_21 = arith.constant 0 : i32
    %28 = tpu.memref_slice %arg2[%10, %c0_i32_21] : memref<513x128xf32, #tpu.memory_space<any>> -> memref<1x128xf32, #tpu.memory_space<any>>
    %c2_i32_22 = arith.constant 2 : i32
    %c0_i32_23 = arith.constant 0 : i32
    %29 = tpu.memref_slice %arg4[%c2_i32_22, %c0_i32_23] : memref<4x128xf32, #tpu.memory_space<vmem>> -> memref<1x128xf32, #tpu.memory_space<vmem>>
    %30 = tpu.memref_slice %arg5[%c2_i32_20] : memref<4x!tpu.dma_semaphore, #tpu.memory_space<semaphore_mem>> -> memref<1x!tpu.dma_semaphore, #tpu.memory_space<semaphore_mem>>
    %31 = tpu.memref_squeeze %30 : memref<1x!tpu.dma_semaphore, #tpu.memory_space<semaphore_mem>> -> memref<!tpu.dma_semaphore, #tpu.memory_space<semaphore_mem>>
    tpu.wait_dma2 semaphore(%31 : memref<!tpu.dma_semaphore, #tpu.memory_space<semaphore_mem>>) src(%28 : memref<1x128xf32, #tpu.memory_space<any>>) dst(%29 : memref<1x128xf32, #tpu.memory_space<vmem>>)
    %c3_i32_24 = arith.constant 3 : i32
    %c0_i32_25 = arith.constant 0 : i32
    %32 = tpu.memref_slice %arg2[%15, %c0_i32_25] : memref<513x128xf32, #tpu.memory_space<any>> -> memref<1x128xf32, #tpu.memory_space<any>>
    %c3_i32_26 = arith.constant 3 : i32
    %c0_i32_27 = arith.constant 0 : i32
    %33 = tpu.memref_slice %arg4[%c3_i32_26, %c0_i32_27] : memref<4x128xf32, #tpu.memory_space<vmem>> -> memref<1x128xf32, #tpu.memory_space<vmem>>
    %34 = tpu.memref_slice %arg5[%c3_i32_24] : memref<4x!tpu.dma_semaphore, #tpu.memory_space<semaphore_mem>> -> memref<1x!tpu.dma_semaphore, #tpu.memory_space<semaphore_mem>>
    %35 = tpu.memref_squeeze %34 : memref<1x!tpu.dma_semaphore, #tpu.memory_space<semaphore_mem>> -> memref<!tpu.dma_semaphore, #tpu.memory_space<semaphore_mem>>
    tpu.wait_dma2 semaphore(%35 : memref<!tpu.dma_semaphore, #tpu.memory_space<semaphore_mem>>) src(%32 : memref<1x128xf32, #tpu.memory_space<any>>) dst(%33 : memref<1x128xf32, #tpu.memory_space<vmem>>)
    %c0_28 = arith.constant 0 : index
    %c0_29 = arith.constant 0 : index
    %36 = vector.load %arg4[%c0_28, %c0_29] : memref<4x128xf32, #tpu.memory_space<vmem>>, vector<4x128xf32>
    %c0_30 = arith.constant 0 : index
    %c0_31 = arith.constant 0 : index
    %37 = vector.load %arg3[%c0_30, %c0_31] : memref<4x128xf32, #tpu.memory_space<vmem>>, vector<4x128xf32>
    tpu.vector_store %arg3[%c0_30, %c0_31], %36 {strides = array<i32>} : memref<4x128xf32, #tpu.memory_space<vmem>>, vector<4x128xf32>,
    return
  }
  func.func @transform_1(%arg0: i32, %arg1: memref<4xi32, #tpu.memory_space<smem>>) -> (i32, i32) {
    %c0_i32 = arith.constant 0 : i32
    %c0_i32_0 = arith.constant 0 : i32
    %c0_i32_1 = arith.constant 0 : i32
    return %c0_i32, %c0_i32_0 : i32, i32
  }
}

</mosaic_0001>

<llo_original>
// kernel: tpu_custom_call.1
$region0: #{tpu_custom_call.1}
  #allocation0 [shape = 'u32[]', space=smem, size = 0x4, offset = 0x4, fixed_abs, tag = 'smem constant byte address 0x4 - core index']
  #allocation1 [shape = 'u32[72,128]{1,0:T(1,128)}', space=vmem, size = 0x9000, scoped, tag = 'internal scratch']
  #allocation2 [shape = 'f32[4,128]{1,0:T(4,128)}', space=vmem, size = 0x800, scoped, tag = 'scratch operand']
  #allocation3 [shape = 's32[4]{0}', space=sflag, size = 0x10, scoped, tag = 'scratch operand']
  #allocation4 [shape = 's32[1]{0}', space=sflag, size = 0x4, scoped, tag = 'scoped memory for tpu_custom_call.1']
  #allocation5 [shape = 'u8[512]{0}', space=smem, size = 0x200, scoped, tag = 'prefetched SMEM operand 0']
  #allocation8 [shape = 's32[]', space=sflag, size = 0x4, offset = 0, fixed_abs, tag = 'sflag constant byte address 0x0 - dummy sync flag']
  #allocation9 [shape = 's32[]', space=sflag, size = 0x4, offset = 0, fixed_abs, tag = 'sflag constant byte address 0x0 - dummy sync flag']
  #allocation10 [shape = 'u32[]', space=smem, size = 0x4, offset = 0x44, fixed_abs, tag = 'smem constant byte address 0x44 - assertion arg 0']
  #allocation11 [shape = 'u32[]', space=smem, size = 0x4, offset = 0x48, fixed_abs, tag = 'smem constant byte address 0x48 - assertion arg 1']
  #allocation12 [shape = 's32[]', space=sflag, size = 0x4, offset = 0, fixed_abs, tag = 'sflag constant byte address 0x0 - dummy sync flag']
  #allocation13 [shape = 's32[]', space=sflag, size = 0x4, offset = 0, fixed_abs, tag = 'sflag constant byte address 0x0 - dummy sync flag']
  #allocation14 [shape = 's32[]', space=sflag, size = 0x4, offset = 0, fixed_abs, tag = 'sflag constant byte address 0x0 - dummy sync flag']
  #allocation15 [shape = 's32[]', space=sflag, size = 0x4, offset = 0, fixed_abs, tag = 'sflag constant byte address 0x0 - dummy sync flag']
  #allocation16 [shape = 's32[]', space=sflag, size = 0x4, offset = 0, fixed_abs, tag = 'sflag constant byte address 0x0 - dummy sync flag']
  #allocation17 [shape = 's32[]', space=sflag, size = 0x4, offset = 0, fixed_abs, tag = 'sflag constant byte address 0x0 - dummy sync flag']
  %s0 = inlined_call_operand.hbm [shape: s32[4], index: 0, kind: input, shape index: {}]
  %s1 = inlined_call_operand.hbm [shape: f32[513,128], index: 1, kind: input, shape index: {}]
  %s2 = inlined_call_operand.hbm [shape: f32[4,128], index: 2, kind: output, shape index: {}]
  %s3 = sld [smem:[#allocation0]]
  $region26: #{tpu_custom_call.1} parent=0
    _
  %s5 = ssub.s32 1, %s3
  %s6 = scalar_select 0, %s5, %s3
  %s8 = sshll.u32 %s0, 4
  %s9 = int_to_ptr.hbm [resolvable:$true] %s8
  %11 = dma.hbm_to_smem %s9, 16, [#allocation5], [#allocation4]
  %13 = dma.done [#allocation4], 16
  %14 = sfence
  $region1: #{tpu_custom_call.1} parent=0
    #allocation6 [shape = 'u8[2048]{0}', space=vmem, size = 0x800, scoped, tag = 'output window, operand 0, single buffered']
    #allocation7 [shape = 's32[1]{0}', space=sflag, size = 0x4, scoped, tag = 'scoped memory for tpu_custom_call.1']
    %15 = vsyncpa [#allocation7], 0
    %s16 = sld [smem:[#allocation5]]
    %s17 = scalar_lea.hbm %s1, %s16
    // Predicated region
    $region2: #{tpu_custom_call.1} parent=1 // pred_check
      _
    $region3: #{tpu_custom_call.1} parent=1 // pred_check_branch
      %19 = sbr.rel target = $region5
    $region4: #{tpu_custom_call.1} parent=1 // pred_region
      %20 = sst [smem:[#allocation10]] [#allocation9]
      %21 = sst [smem:[#allocation11]] [#allocation8]
    $region5: #{tpu_custom_call.1} parent=1 // pred_fallthru
      _
    %23 = shalt.err (0)
    %s25 = sshll.u32 %s17, 4
    %s26 = int_to_ptr.hbm [resolvable:$true] %s25
    %s27 = sshll.u32 [#allocation2], 4
    %s28 = int_to_ptr.vmem [resolvable:$true] %s27
    %30 = dma.hbm_to_vmem [thread:$0]  %s26, 16, %s28, [#allocation3]
    %s31 = sld [smem:[#allocation5 + $0x1]]
    %s32 = scalar_lea.hbm %s1, %s31
    %s33 = scalar_lea.vmem [#allocation2], 1
    %s34 = scalar_lea.sflag [#allocation3], 1
    // Predicated region
    $region6: #{tpu_custom_call.1} parent=1 // pred_check
      _
    $region7: #{tpu_custom_call.1} parent=1 // pred_check_branch
      %36 = sbr.rel target = $region9
    $region8: #{tpu_custom_call.1} parent=1 // pred_region
      %37 = sst [smem:[#allocation10]] [#allocation13]
      %38 = sst [smem:[#allocation11]] [#allocation12]
    $region9: #{tpu_custom_call.1} parent=1 // pred_fallthru
      _
    %40 = shalt.err (0)
    %s42 = sshll.u32 %s32, 4
    %s43 = int_to_ptr.hbm [resolvable:$true] %s42
    %s44 = sshll.u32 %s33, 4
    %s45 = int_to_ptr.vmem [resolvable:$true] %s44
    %47 = dma.hbm_to_vmem [thread:$0]  %s43, 16, %s45, %s34
    %s48 = sld [smem:[#allocation5 + $0x2]]
    %s49 = scalar_lea.hbm %s1, %s48
    %s50 = scalar_lea.vmem [#allocation2], 2
    %s51 = scalar_lea.sflag [#allocation3], 2
    // Predicated region
    $region10: #{tpu_custom_call.1} parent=1 // pred_check
      _
    $region11: #{tpu_custom_call.1} parent=1 // pred_check_branch
      %53 = sbr.rel target = $region13
    $region12: #{tpu_custom_call.1} parent=1 // pred_region
      %54 = sst [smem:[#allocation10]] [#allocation15]
      %55 = sst [smem:[#allocation11]] [#allocation14]
    $region13: #{tpu_custom_call.1} parent=1 // pred_fallthru
      _
    %57 = shalt.err (0)
    %s59 = sshll.u32 %s49, 4
    %s60 = int_to_ptr.hbm [resolvable:$true] %s59
    %s61 = sshll.u32 %s50, 4
    %s62 = int_to_ptr.vmem [resolvable:$true] %s61
    %64 = dma.hbm_to_vmem [thread:$0]  %s60, 16, %s62, %s51
    %s65 = sld [smem:[#allocation5 + $0x3]]
    %s66 = scalar_lea.hbm %s1, %s65
    %s67 = scalar_lea.vmem [#allocation2], 3
    %s68 = scalar_lea.sflag [#allocation3], 3
    // Predicated region
    $region14: #{tpu_custom_call.1} parent=1 // pred_check
      _
    $region15: #{tpu_custom_call.1} parent=1 // pred_check_branch
      %70 = sbr.rel target = $region17
    $region16: #{tpu_custom_call.1} parent=1 // pred_region
      %71 = sst [smem:[#allocation10]] [#allocation17]
      %72 = sst [smem:[#allocation11]] [#allocation16]
    $region17: #{tpu_custom_call.1} parent=1 // pred_fallthru
      _
    %74 = shalt.err (0)
    %s76 = sshll.u32 %s66, 4
    %s77 = int_to_ptr.hbm [resolvable:$true] %s76
    %s78 = sshll.u32 %s67, 4
    %s79 = int_to_ptr.vmem [resolvable:$true] %s78
    %81 = dma.hbm_to_vmem [thread:$0]  %s77, 16, %s79, %s68
    %s82 = smul.u32 1, 1
    %s83 = sshll.u32 %s82, 4
    %84 = dma.done [#allocation3], %s83
    %s85 = sshll.u32 %s82, 4
    %86 = dma.done %s34, %s85
    %s87 = sshll.u32 %s82, 4
    %88 = dma.done %s51, %s87
    %s89 = sshll.u32 %s82, 4
    %90 = dma.done %s68, %s89
    %v91 = vld [vmem:[#allocation2] sm:$0xf]
    %92 = vst [vmem:[#allocation6] sm:$0xf] %v91
    // Predicated region
    $region18: #{tpu_custom_call.1} parent=1 // pred_check
      _
    $region19: #{tpu_custom_call.1} parent=1 // pred_check_branch
      %94 = sbr.rel (0) target = $region21
    $region20: #{tpu_custom_call.1} parent=1 // pred_region
      %96 = vsyncadd [#allocation7], 0
      %s98 = sshll.u32 [#allocation6], 4
      %s99 = int_to_ptr.vmem [resolvable:$true] %s98
      %s100 = sshll.u32 %s2, 4
      %s101 = int_to_ptr.hbm [resolvable:$true] %s100
      %103 = dma.vmem_to_hbm [thread:$0]  %s99, 64, %s101, [#allocation7]
    $region21: #{tpu_custom_call.1} parent=1 // pred_fallthru
      _
    // Predicated region
    $region22: #{tpu_custom_call.1} parent=1 // pred_check
      _
    $region23: #{tpu_custom_call.1} parent=1 // pred_check_branch
      %105 = sbr.rel (0) target = $region25
    $region24: #{tpu_custom_call.1} parent=1 // pred_region
      %107 = dma.done [#allocation7], 64
    $region25: #{tpu_custom_call.1} parent=1 // pred_fallthru
      _
    %108 = vsyncpa [#allocation7], 1
  %109 = vsyncmov [#allocation3]
  %s110 = vpop.sfrf %109
  %p111 = scmp.eq.s32.totalorder %s110, 0
  %p112 = pneg %p111
  %114 = shalt.err (%p112)
  %s115 = scalar_lea.sflag [#allocation3], 1
  %116 = vsyncmov %s115
  %s117 = vpop.sfrf %116
  %p118 = scmp.eq.s32.totalorder %s117, 0
  %p119 = pneg %p118
  %121 = shalt.err (%p119)
  %s122 = scalar_lea.sflag [#allocation3], 2
  %123 = vsyncmov %s122
  %s124 = vpop.sfrf %123
  %p125 = scmp.eq.s32.totalorder %s124, 0
  %p126 = pneg %p125
  %128 = shalt.err (%p126)
  %s129 = scalar_lea.sflag [#allocation3], 3
  %130 = vsyncmov %s129
  %s131 = vpop.sfrf %130
  %p132 = scmp.eq.s32.totalorder %s131, 0
  %p133 = pneg %p132
  %135 = shalt.err (%p133)

</llo_original>
